<compile_context>
chip_gen: v6e
topology: v6e:2x2x1
jax: 0.10.0
libtpu: 0.0.40
codegen_flags: <defaults>
</compile_context>

<pallas_src>
import jax
import jax.numpy as jnp
from jax import lax
from jax.experimental import pallas as pl
from jax.experimental.pallas import tpu as pltpu


def _round_up(x, m):
    return ((x + m - 1) // m) * m


def _pick_tile_k(d):
    # Small D: do the whole reduction in one grid step (avoids per-step overhead).
    if d <= 2048:
        return d
    for tk in (1024, 512, 256, 128):
        if d % tk == 0:
            return tk
    return d  # fallback: single K step (always divides)


def linear_kernel(x_ref, w_ref, b_ref, o_ref, acc_ref):
    # x_ref: (tn, tk), w_ref: (Cp, tk)  [PyTorch (out_features, in_features) layout],
    # b_ref: (1, Cp), o_ref: (tn, Cp), acc_ref: (tn, Cp) f32 VMEM scratch.
    k = pl.program_id(1)

    @pl.when(k == 0)
    def _():
        # Fold bias into the accumulator init: acc = broadcast(bias).
        acc_ref[...] = jnp.broadcast_to(
            b_ref[...].astype(jnp.float32), acc_ref.shape)

    # Contract on the last dim of BOTH operands: (tn, tk) . (Cp, tk)^T -> (tn, Cp).
    # Keeps the weight lane-dense (last dim = D, multiple of 128) and lets the MXU
    # consume the transposed RHS natively.
    acc_ref[...] += lax.dot_general(
        x_ref[...], w_ref[...],
        dimension_numbers=(((1,), (1,)), ((), ())),
        preferred_element_type=jnp.float32)

    @pl.when(k == pl.num_programs(1) - 1)
    def _():
        o_ref[...] = acc_ref[...].astype(o_ref.dtype)


def my_model_forward(x_nchw, weight, bias):
    """x_nchw: (N, C, H, W) float32; weight: (num_classes, input_size) (PyTorch layout);
    bias: (num_classes,). Returns (N, num_classes)."""
    N = x_nchw.shape[0]
    x_flat = x_nchw.reshape(N, -1)          # torch.flatten(x, 1)
    D = x_flat.shape[1]
    C = weight.shape[0]
    assert weight.shape == (C, D)

    # Lane-dense class dim (weight rows / output columns) -> multiple of 128.
    C_pad = _round_up(C, 128)
    # Sublane-friendly batch dim; tile N only when it is large enough to matter.
    if N <= 512:
        tile_n = _round_up(N, 8)
    else:
        tile_n = 256
    N_pad = _round_up(N, tile_n)
    tile_k = _pick_tile_k(D)

    x_p = x_flat if N_pad == N else jnp.pad(x_flat, ((0, N_pad - N), (0, 0)))
    w_p = weight if C_pad == C else jnp.pad(weight, ((0, C_pad - C), (0, 0)))
    b_p = bias if C_pad == C else jnp.pad(bias, ((0, C_pad - C),))
    b2d = b_p.reshape(1, C_pad)

    grid = (N_pad // tile_n, D // tile_k)

    # TODO(synk): for a scaled-up model, cast x/weight to bf16 before the MXU dot
    # (keep f32 accumulation) — skipped here to preserve exact f32 semantics.
    out_pad = pl.pallas_call(
        linear_kernel,
        out_shape=jax.ShapeDtypeStruct((N_pad, C_pad), x_flat.dtype),
        grid_spec=pltpu.PrefetchScalarGridSpec(
            num_scalar_prefetch=0,
            grid=grid,
            in_specs=[
                pl.BlockSpec((tile_n, tile_k), lambda i, k: (i, k)),
                pl.BlockSpec((C_pad, tile_k), lambda i, k: (0, k)),
                pl.BlockSpec((1, C_pad), lambda i, k: (0, 0)),
            ],
            out_specs=pl.BlockSpec((tile_n, C_pad), lambda i, k: (i, 0)),
            scratch_shapes=[pltpu.VMEM((tile_n, C_pad), jnp.float32)],
        ),
        compiler_params=pltpu.CompilerParams(
            dimension_semantics=("parallel", "arbitrary")),
    )(x_p, w_p, b2d)

    return out_pad[:N, :C]


if __name__ == "__main__":
    # rock-paper-scissors style: 3 classes, small RGB image input
    batch, channels, spatial = 2, 3, 16
    input_size = channels * spatial * spatial      # 768
    num_classes = 3

    key = jax.random.PRNGKey(0)
    kx, kw, kb = jax.random.split(key, 3)

    x = jax.random.normal(kx, (batch, channels, spatial, spatial), dtype=jnp.float32)
    # Deterministic init mimicking nn.Linear's uniform(-1/sqrt(fan_in), 1/sqrt(fan_in))
    bound = 1.0 / (input_size ** 0.5)
    weight = jax.random.uniform(kw, (num_classes, input_size), jnp.float32, -bound, bound)
    bias = jax.random.uniform(kb, (num_classes,), jnp.float32, -bound, bound)

    out = my_model_forward(x, weight, bias)
    jax.block_until_ready(out)

    # Reference check in plain JAX
    ref = x.reshape(batch, -1) @ weight.T + bias
    assert out.shape == (batch, num_classes)
    assert jnp.allclose(out, ref, atol=1e-4, rtol=1e-4)

    print("KERNEL_OK")
</pallas_src>

<mosaic_0001>
module attributes {stable_mosaic.version = 11 : i64} {
  func.func @linear_kernel(%arg0: i32, %arg1: i32, %arg2: memref<8x768xf32, #tpu.memory_space<vmem>>, %arg3: memref<128x768xf32, #tpu.memory_space<vmem>>, %arg4: memref<1x128xf32, #tpu.memory_space<vmem>>, %arg5: memref<8x128xf32, #tpu.memory_space<vmem>>, %arg6: memref<8x128xf32, #tpu.memory_space<vmem>>) attributes {dimension_semantics = [#tpu.dimension_semantics<parallel>, #tpu.dimension_semantics<arbitrary>], iteration_bounds = array<i64: 1, 1>, scalar_prefetch = 0 : i64, scratch_operands = 1 : i64, tpu.core_type = #tpu.core_type<tc>, window_params = [{transform_indices = @transform_0, window_bounds = array<i64: 8, 768>}, {transform_indices = @transform_1, window_bounds = array<i64: 128, 768>}, {pipeline_mode = #tpu.pipeline_mode<synchronous>, transform_indices = @transform_2, window_bounds = array<i64: 1, 128>}, {transform_indices = @transform_3, window_bounds = array<i64: 8, 128>}]} {
    %c0_i32 = arith.constant 0 : i32
    %0 = arith.cmpi eq, %arg1, %c0_i32 : i32
    %1 = arith.extui %0 : i1 to i32
    %c0_i32_0 = arith.constant 0 : i32
    %2 = arith.cmpi ne, %1, %c0_i32_0 : i32
    scf.if %2 {
      %c0_10 = arith.constant 0 : index
      %c0_11 = arith.constant 0 : index
      %12 = vector.load %arg4[%c0_10, %c0_11] : memref<1x128xf32, #tpu.memory_space<vmem>>, vector<1x128xf32>
      %13 = vector.shape_cast %12 : vector<1x128xf32> to vector<1x128xf32>
      %14 = vector.broadcast %13 : vector<1x128xf32> to vector<8x128xf32>
      %c0_12 = arith.constant 0 : index
      %c0_13 = arith.constant 0 : index
      %15 = vector.load %arg6[%c0_12, %c0_13] : memref<8x128xf32, #tpu.memory_space<vmem>>, vector<8x128xf32>
      tpu.vector_store %arg6[%c0_12, %c0_13], %14 {strides = array<i32>} : memref<8x128xf32, #tpu.memory_space<vmem>>, vector<8x128xf32>,
    } else {
    }
    %c0 = arith.constant 0 : index
    %c0_1 = arith.constant 0 : index
    %3 = vector.load %arg6[%c0, %c0_1] : memref<8x128xf32, #tpu.memory_space<vmem>>, vector<8x128xf32>
    %c0_2 = arith.constant 0 : index
    %c0_3 = arith.constant 0 : index
    %4 = vector.load %arg2[%c0_2, %c0_3] : memref<8x768xf32, #tpu.memory_space<vmem>>, vector<8x768xf32>
    %c0_4 = arith.constant 0 : index
    %c0_5 = arith.constant 0 : index
    %5 = vector.load %arg3[%c0_4, %c0_5] : memref<128x768xf32, #tpu.memory_space<vmem>>, vector<128x768xf32>
    %cst = arith.constant dense<0.000000e+00> : vector<8x128xf32>
    %6 = tpu.matmul %4, %5, %cst {dimension_numbers = #tpu.dot_dimension_numbers<[1], [1], [0], [0], [0, 0, 1, 0], [], []>} : vector<8x768xf32>, vector<128x768xf32>, vector<8x128xf32> -> vector<8x128xf32>
    %7 = arith.addf %3, %6 : vector<8x128xf32>
    %c0_6 = arith.constant 0 : index
    %c0_7 = arith.constant 0 : index
    %8 = vector.load %arg6[%c0_6, %c0_7] : memref<8x128xf32, #tpu.memory_space<vmem>>, vector<8x128xf32>
    tpu.vector_store %arg6[%c0_6, %c0_7], %7 {strides = array<i32>} : memref<8x128xf32, #tpu.memory_space<vmem>>, vector<8x128xf32>,
    %c0_i32_8 = arith.constant 0 : i32
    %9 = arith.cmpi eq, %arg1, %c0_i32_8 : i32
    %10 = arith.extui %9 : i1 to i32
    %c0_i32_9 = arith.constant 0 : i32
    %11 = arith.cmpi ne, %10, %c0_i32_9 : i32
    scf.if %11 {
      %c0_10 = arith.constant 0 : index
      %c0_11 = arith.constant 0 : index
      %12 = vector.load %arg6[%c0_10, %c0_11] : memref<8x128xf32, #tpu.memory_space<vmem>>, vector<8x128xf32>
      %c0_12 = arith.constant 0 : index
      %c0_13 = arith.constant 0 : index
      %13 = vector.load %arg5[%c0_12, %c0_13] : memref<8x128xf32, #tpu.memory_space<vmem>>, vector<8x128xf32>
      tpu.vector_store %arg5[%c0_12, %c0_13], %12 {strides = array<i32>} : memref<8x128xf32, #tpu.memory_space<vmem>>, vector<8x128xf32>,
    } else {
    }
    return
  }
  func.func @transform_0(%arg0: i32, %arg1: i32) -> (i32, i32) {
    %c0_i32 = arith.constant 0 : i32
    return %arg0, %arg1 : i32, i32
  }
  func.func @transform_1(%arg0: i32, %arg1: i32) -> (i32, i32) {
    %c0_i32 = arith.constant 0 : i32
    %c0_i32_0 = arith.constant 0 : i32
    return %c0_i32, %arg1 : i32, i32
  }
  func.func @transform_2(%arg0: i32, %arg1: i32) -> (i32, i32) {
    %c0_i32 = arith.constant 0 : i32
    %c0_i32_0 = arith.constant 0 : i32
    %c0_i32_1 = arith.constant 0 : i32
    return %c0_i32, %c0_i32_0 : i32, i32
  }
  func.func @transform_3(%arg0: i32, %arg1: i32) -> (i32, i32) {
    %c0_i32 = arith.constant 0 : i32
    %c0_i32_0 = arith.constant 0 : i32
    return %arg0, %c0_i32 : i32, i32
  }
}

</mosaic_0001>

<llo_original>
// kernel: tpu_custom_call.1
$region0: #{tpu_custom_call.1}
  #allocation0 [shape = 'u32[]', space=smem, size = 0x4, offset = 0x4, fixed_abs, tag = 'smem constant byte address 0x4 - core index']
  #allocation1 [shape = 'u32[144,128]{1,0:T(1,128)}', space=vmem, size = 0x12000, scoped, tag = 'internal scratch']
  #allocation2 [shape = 'f32[8,128]{1,0:T(8,128)}', space=vmem, size = 0x1000, scoped, tag = 'scratch operand']
  %s0 = inlined_call_operand.hbm [shape: f32[8,768], index: 0, kind: input, shape index: {}]
  %s1 = inlined_call_operand.hbm [shape: f32[128,768], index: 1, kind: input, shape index: {}]
  %s2 = inlined_call_operand.vmem [shape: f32[1,128], index: 2, kind: input, shape index: {}]
  %s3 = inlined_call_operand.hbm [shape: f32[8,128], index: 3, kind: output, shape index: {}]
  %s4 = sld [smem:[#allocation0]]
  $region38: #{tpu_custom_call.1} parent=0
    _
  %s6 = ssub.s32 1, %s4
  %s7 = scalar_select 0, %s6, %s4
  $region1: #{tpu_custom_call.1} parent=0
    #allocation3 [shape = 'u8[24576]{0}', space=vmem, size = 0x6000, scoped, tag = 'input window, operand 0, single buffered']
    #allocation4 [shape = 's32[1]{0}', space=sflag, size = 0x4, scoped, tag = 'scoped memory for tpu_custom_call.1']
    #allocation5 [shape = 's32[1]{0}', space=sflag, size = 0x4, scoped, tag = 'scoped memory for tpu_custom_call.1']
    #allocation6 [shape = 'u8[393216]{0}', space=vmem, size = 0x60000, scoped, tag = 'input window, operand 1, single buffered']
    #allocation7 [shape = 's32[1]{0}', space=sflag, size = 0x4, scoped, tag = 'scoped memory for tpu_custom_call.1']
    #allocation8 [shape = 'u8[4096]{0}', space=vmem, size = 0x1000, scoped, tag = 'output window, operand 0, single buffered']
    %8 = vsyncpa [#allocation4], 0
    %9 = vsyncpa [#allocation7], 0
    %10 = vsyncpa [#allocation5], 0
    // Predicated region
    $region2: #{tpu_custom_call.1} parent=1 // pred_check
      _
    $region3: #{tpu_custom_call.1} parent=1 // pred_check_branch
      %12 = sbr.rel (0) target = $region5
    $region4: #{tpu_custom_call.1} parent=1 // pred_region
      %s14 = ssub.s32 768, 768
      %15 = vsyncadd [#allocation4], %s14
      %s17 = sshll.u32 [#allocation3], 4
      %s18 = int_to_ptr.vmem [resolvable:$true] %s17
      %20 = dma.hbm_to_vmem [thread:$0]  %s0, 768, %s18, [#allocation4]
    $region5: #{tpu_custom_call.1} parent=1 // pred_fallthru
      _
    // Predicated region
    $region6: #{tpu_custom_call.1} parent=1 // pred_check
      _
    $region7: #{tpu_custom_call.1} parent=1 // pred_check_branch
      %22 = sbr.rel (0) target = $region9
    $region8: #{tpu_custom_call.1} parent=1 // pred_region
      %s24 = ssub.s32 12288, 12288
      %25 = vsyncadd [#allocation7], %s24
      %s26 = sshll.u32 [#allocation6], 4
      %s27 = int_to_ptr.vmem [resolvable:$true] %s26
      %32 = dma.hbm_to_vmem [thread:$0]  %s1, 12288, %s27, [#allocation7], 768, 768, 48
    $region9: #{tpu_custom_call.1} parent=1 // pred_fallthru
      _
    // Predicated region
    $region10: #{tpu_custom_call.1} parent=1 // pred_check
      _
    $region11: #{tpu_custom_call.1} parent=1 // pred_check_branch
      %34 = sbr.rel (0) target = $region13
    $region12: #{tpu_custom_call.1} parent=1 // pred_region
      _
    $region13: #{tpu_custom_call.1} parent=1 // pred_fallthru
      _
    // Predicated region
    $region14: #{tpu_custom_call.1} parent=1 // pred_check
      _
    $region15: #{tpu_custom_call.1} parent=1 // pred_check_branch
      %36 = sbr.rel (0) target = $region17
    $region16: #{tpu_custom_call.1} parent=1 // pred_region
      %37 = dma.done [#allocation4], 768
    $region17: #{tpu_custom_call.1} parent=1 // pred_fallthru
      _
    // Predicated region
    $region18: #{tpu_custom_call.1} parent=1 // pred_check
      _
    $region19: #{tpu_custom_call.1} parent=1 // pred_check_branch
      %39 = sbr.rel (0) target = $region21
    $region20: #{tpu_custom_call.1} parent=1 // pred_region
      %40 = dma.done [#allocation7], 12288
    $region21: #{tpu_custom_call.1} parent=1 // pred_fallthru
      _
    %p41 = scmp.eq.s32.totalorder 0, 0
    // Predicated region
    $region22: #{tpu_custom_call.1} parent=1 // pred_check
      %p42 = pneg %p41
    $region23: #{tpu_custom_call.1} parent=1 // pred_check_branch
      %44 = sbr.rel (%p42) target = $region25
    $region24: #{tpu_custom_call.1} parent=1 // pred_region
      %v45 = vld [vmem:[%s2] sm:$0x1]
      %v47 = vlaneseq
      %v48 = vshrl.u32 %v47, 7
      %v49 = vsub.s32 0, %v48
      %v50 = vrot.slane %v45, %v49
      %52 = vst [vmem:[#allocation2] sm:$0xff] %v50
    $region25: #{tpu_custom_call.1} parent=1 // pred_fallthru
      _
    %v53 = vld [vmem:[#allocation2] sm:$0xff]
    %v54 = vld [vmem:[#allocation3] sm:$0xff]
    %v55 = vld [vmem:[#allocation3 + $0x8] sm:$0xff]
    %v56 = vld [vmem:[#allocation3 + $0x10] sm:$0xff]
    %v57 = vld [vmem:[#allocation3 + $0x18] sm:$0xff]
    %v58 = vld [vmem:[#allocation3 + $0x20] sm:$0xff]
    %v59 = vld [vmem:[#allocation3 + $0x28] sm:$0xff]
    %v60 = vld [vmem:[#allocation6] sm:$0xff]
    %v61 = vld [vmem:[#allocation6 + $0x8] sm:$0xff]
    %v62 = vld [vmem:[#allocation6 + $0x10] sm:$0xff]
    %v63 = vld [vmem:[#allocation6 + $0x18] sm:$0xff]
    %v64 = vld [vmem:[#allocation6 + $0x20] sm:$0xff]
    %v65 = vld [vmem:[#allocation6 + $0x28] sm:$0xff]
    %v66 = vld [vmem:[#allocation6 + $0x30] sm:$0xff]
    %v67 = vld [vmem:[#allocation6 + $0x38] sm:$0xff]
    %v68 = vld [vmem:[#allocation6 + $0x40] sm:$0xff]
    %v69 = vld [vmem:[#allocation6 + $0x48] sm:$0xff]
    %v70 = vld [vmem:[#allocation6 + $0x50] sm:$0xff]
    %v71 = vld [vmem:[#allocation6 + $0x58] sm:$0xff]
    %v72 = vld [vmem:[#allocation6 + $0x60] sm:$0xff]
    %v73 = vld [vmem:[#allocation6 + $0x68] sm:$0xff]
    %v74 = vld [vmem:[#allocation6 + $0x70] sm:$0xff]
    %v75 = vld [vmem:[#allocation6 + $0x78] sm:$0xff]
    %v76 = vld [vmem:[#allocation6 + $0x80] sm:$0xff]
    %v77 = vld [vmem:[#allocation6 + $0x88] sm:$0xff]
    %v78 = vld [vmem:[#allocation6 + $0x90] sm:$0xff]
    %v79 = vld [vmem:[#allocation6 + $0x98] sm:$0xff]
    %v80 = vld [vmem:[#allocation6 + $0xa0] sm:$0xff]
    %v81 = vld [vmem:[#allocation6 + $0xa8] sm:$0xff]
    %v82 = vld [vmem:[#allocation6 + $0xb0] sm:$0xff]
    %v83 = vld [vmem:[#allocation6 + $0xb8] sm:$0xff]
    %v84 = vld [vmem:[#allocation6 + $0xc0] sm:$0xff]
    %v85 = vld [vmem:[#allocation6 + $0xc8] sm:$0xff]
    %v86 = vld [vmem:[#allocation6 + $0xd0] sm:$0xff]
    %v87 = vld [vmem:[#allocation6 + $0xd8] sm:$0xff]
    %v88 = vld [vmem:[#allocation6 + $0xe0] sm:$0xff]
    %v89 = vld [vmem:[#allocation6 + $0xe8] sm:$0xff]
    %v90 = vld [vmem:[#allocation6 + $0xf0] sm:$0xff]
    %v91 = vld [vmem:[#allocation6 + $0xf8] sm:$0xff]
    %v92 = vld [vmem:[#allocation6 + $0x100] sm:$0xff]
    %v93 = vld [vmem:[#allocation6 + $0x108] sm:$0xff]
    %v94 = vld [vmem:[#allocation6 + $0x110] sm:$0xff]
    %v95 = vld [vmem:[#allocation6 + $0x118] sm:$0xff]
    %v96 = vld [vmem:[#allocation6 + $0x120] sm:$0xff]
    %v97 = vld [vmem:[#allocation6 + $0x128] sm:$0xff]
    %v98 = vld [vmem:[#allocation6 + $0x130] sm:$0xff]
    %v99 = vld [vmem:[#allocation6 + $0x138] sm:$0xff]
    %v100 = vld [vmem:[#allocation6 + $0x140] sm:$0xff]
    %v101 = vld [vmem:[#allocation6 + $0x148] sm:$0xff]
    %v102 = vld [vmem:[#allocation6 + $0x150] sm:$0xff]
    %v103 = vld [vmem:[#allocation6 + $0x158] sm:$0xff]
    %v104 = vld [vmem:[#allocation6 + $0x160] sm:$0xff]
    %v105 = vld [vmem:[#allocation6 + $0x168] sm:$0xff]
    %v106 = vld [vmem:[#allocation6 + $0x170] sm:$0xff]
    %v107 = vld [vmem:[#allocation6 + $0x178] sm:$0xff]
    %v108 = vld [vmem:[#allocation6 + $0x180] sm:$0xff]
    %v109 = vld [vmem:[#allocation6 + $0x188] sm:$0xff]
    %v110 = vld [vmem:[#allocation6 + $0x190] sm:$0xff]
    %v111 = vld [vmem:[#allocation6 + $0x198] sm:$0xff]
    %v112 = vld [vmem:[#allocation6 + $0x1a0] sm:$0xff]
    %v113 = vld [vmem:[#allocation6 + $0x1a8] sm:$0xff]
    %v114 = vld [vmem:[#allocation6 + $0x1b0] sm:$0xff]
    %v115 = vld [vmem:[#allocation6 + $0x1b8] sm:$0xff]
    %v116 = vld [vmem:[#allocation6 + $0x1c0] sm:$0xff]
    %v117 = vld [vmem:[#allocation6 + $0x1c8] sm:$0xff]
    %v118 = vld [vmem:[#allocation6 + $0x1d0] sm:$0xff]
    %v119 = vld [vmem:[#allocation6 + $0x1d8] sm:$0xff]
    %v120 = vld [vmem:[#allocation6 + $0x1e0] sm:$0xff]
    %v121 = vld [vmem:[#allocation6 + $0x1e8] sm:$0xff]
    %v122 = vld [vmem:[#allocation6 + $0x1f0] sm:$0xff]
    %v123 = vld [vmem:[#allocation6 + $0x1f8] sm:$0xff]
    %v124 = vld [vmem:[#allocation6 + $0x200] sm:$0xff]
    %v125 = vld [vmem:[#allocation6 + $0x208] sm:$0xff]
    %v126 = vld [vmem:[#allocation6 + $0x210] sm:$0xff]
    %v127 = vld [vmem:[#allocation6 + $0x218] sm:$0xff]
    %v128 = vld [vmem:[#allocation6 + $0x220] sm:$0xff]
    %v129 = vld [vmem:[#allocation6 + $0x228] sm:$0xff]
    %v130 = vld [vmem:[#allocation6 + $0x230] sm:$0xff]
    %v131 = vld [vmem:[#allocation6 + $0x238] sm:$0xff]
    %v132 = vld [vmem:[#allocation6 + $0x240] sm:$0xff]
    %v133 = vld [vmem:[#allocation6 + $0x248] sm:$0xff]
    %v134 = vld [vmem:[#allocation6 + $0x250] sm:$0xff]
    %v135 = vld [vmem:[#allocation6 + $0x258] sm:$0xff]
    %v136 = vld [vmem:[#allocation6 + $0x260] sm:$0xff]
    %v137 = vld [vmem:[#allocation6 + $0x268] sm:$0xff]
    %v138 = vld [vmem:[#allocation6 + $0x270] sm:$0xff]
    %v139 = vld [vmem:[#allocation6 + $0x278] sm:$0xff]
    %v140 = vld [vmem:[#allocation6 + $0x280] sm:$0xff]
    %v141 = vld [vmem:[#allocation6 + $0x288] sm:$0xff]
    %v142 = vld [vmem:[#allocation6 + $0x290] sm:$0xff]
    %v143 = vld [vmem:[#allocation6 + $0x298] sm:$0xff]
    %v144 = vld [vmem:[#allocation6 + $0x2a0] sm:$0xff]
    %v145 = vld [vmem:[#allocation6 + $0x2a8] sm:$0xff]
    %v146 = vld [vmem:[#allocation6 + $0x2b0] sm:$0xff]
    %v147 = vld [vmem:[#allocation6 + $0x2b8] sm:$0xff]
    %v148 = vld [vmem:[#allocation6 + $0x2c0] sm:$0xff]
    %v149 = vld [vmem:[#allocation6 + $0x2c8] sm:$0xff]
    %v150 = vld [vmem:[#allocation6 + $0x2d0] sm:$0xff]
    %v151 = vld [vmem:[#allocation6 + $0x2d8] sm:$0xff]
    %v152 = vld [vmem:[#allocation6 + $0x2e0] sm:$0xff]
    %v153 = vld [vmem:[#allocation6 + $0x2e8] sm:$0xff]
    %v154 = vld [vmem:[#allocation6 + $0x2f0] sm:$0xff]
    %v155 = vld [vmem:[#allocation6 + $0x2f8] sm:$0xff]
    %156 = vmatprep.subr.mxu0 %v151
    %157 = vmatpush1.xpose.msra.mxu0 %v150
    %158 = vmatprep.subr.mxu0 %v145
    %159 = vmatpush1.xpose.msra.mxu0 %v144
    %160 = vmatprep.subr.mxu0 %v139
    %161 = vmatpush1.xpose.msra.mxu0 %v138
    %162 = vmatprep.subr.mxu0 %v133
    %163 = vmatpush1.xpose.msra.mxu0 %v132
    %164 = vmatprep.subr.mxu0 %v127
    %165 = vmatpush1.xpose.msra.mxu0 %v126
    %166 = vmatprep.subr.mxu0 %v121
    %167 = vmatpush1.xpose.msra.mxu0 %v120
    %168 = vmatprep.subr.mxu0 %v115
    %169 = vmatpush1.xpose.msra.mxu0 %v114
    %170 = vmatprep.subr.mxu0 %v109
    %171 = vmatpush1.xpose.msra.mxu0 %v108
    %172 = vmatprep.subr.mxu0 %v103
    %173 = vmatpush1.xpose.msra.mxu0 %v102
    %174 = vmatprep.subr.mxu0 %v97
    %175 = vmatpush1.xpose.msra.mxu0 %v96
    %176 = vmatprep.subr.mxu0 %v91
    %177 = vmatpush1.xpose.msra.mxu0 %v90
    %178 = vmatprep.subr.mxu0 %v85
    %179 = vmatpush1.xpose.msra.mxu0 %v84
    %180 = vmatprep.subr.mxu0 %v79
    %181 = vmatpush1.xpose.msra.mxu0 %v78
    %182 = vmatprep.subr.mxu0 %v73
    %183 = vmatpush1.xpose.msra.mxu0 %v72
    %184 = vmatprep.subr.mxu0 %v67
    %185 = vmatpush1.xpose.msra.mxu0 %v66
    %186 = vmatprep.subr.mxu0 %v61
    %187 = vmatpush1.xpose.msra.mxu0 %v60
    %188 = vmatprep.subr.mxu0 0.0
    %189 = vmatpush2.xpose.msra.mxu0 0.0
    %190 = vmatprep.subr.mxu0 0.0
    %191 = vmatpush2.xpose.msra.mxu0 0.0
    %192 = vmatprep.subr.mxu0 0.0
    %193 = vmatpush2.xpose.msra.mxu0 0.0
    %194 = vmatprep.subr.mxu0 0.0
    %195 = vmatpush2.xpose.msra.mxu0 0.0
    %196 = vmatprep.subr.mxu0 0.0
    %197 = vmatpush2.xpose.msra.mxu0 0.0
    %198 = vmatprep.subr.mxu0 0.0
    %199 = vmatpush2.xpose.msra.mxu0 0.0
    %200 = vmatprep.subr.mxu0 0.0
    %201 = vmatpush2.xpose.msra.mxu0 0.0
    %202 = vmatprep.subr.mxu0 0.0
    %203 = vmatpush2.xpose.msra.mxu0 0.0
    %204 = vmatprep.subr.mxu0 0.0
    %205 = vmatpush2.xpose.msra.mxu0 0.0
    %206 = vmatprep.subr.mxu0 0.0
    %207 = vmatpush2.xpose.msra.mxu0 0.0
    %208 = vmatprep.subr.mxu0 0.0
    %209 = vmatpush2.xpose.msra.mxu0 0.0
    %210 = vmatprep.subr.mxu0 0.0
    %211 = vmatpush2.xpose.msra.mxu0 0.0
    %212 = vmatprep.subr.mxu0 0.0
    %213 = vmatpush2.xpose.msra.mxu0 0.0
    %214 = vmatprep.subr.mxu0 0.0
    %215 = vmatpush2.xpose.msra.mxu0 0.0
    %216 = vmatprep.subr.mxu0 0.0
    %217 = vmatpush2.xpose.msra.mxu0 0.0
    %218 = vmatprep.subr.mxu0 0.0
    %219 = vmatpush2.xpose.msra.mxu0 0.0
    %220 = vmatprep.mubr.f32.mxu0 %v55
    %221 = vmatmul.mubr.f32.gmra.mxu0 %v54
    %v222 = vpop.f32.mrf.mxu0
    %v223 = vadd.f32 0.0, %v222
    %v224 = vpop.f32.mrf.mxu0
    %225 = vdwg.mxu0
    %226 = vmatprep.subr.mxu0 %v153
    %227 = vmatpush1.xpose.msra.mxu0 %v152
    %228 = vmatprep.subr.mxu0 %v147
    %229 = vmatpush1.xpose.msra.mxu0 %v146
    %230 = vmatprep.subr.mxu0 %v141
    %231 = vmatpush1.xpose.msra.mxu0 %v140
    %232 = vmatprep.subr.mxu0 %v135
    %233 = vmatpush1.xpose.msra.mxu0 %v134
    %234 = vmatprep.subr.mxu0 %v129
    %235 = vmatpush1.xpose.msra.mxu0 %v128
    %236 = vmatprep.subr.mxu0 %v123
    %237 = vmatpush1.xpose.msra.mxu0 %v122
    %238 = vmatprep.subr.mxu0 %v117
    %239 = vmatpush1.xpose.msra.mxu0 %v116
    %240 = vmatprep.subr.mxu0 %v111
    %241 = vmatpush1.xpose.msra.mxu0 %v110
    %242 = vmatprep.subr.mxu0 %v105
    %243 = vmatpush1.xpose.msra.mxu0 %v104
    %244 = vmatprep.subr.mxu0 %v99
    %245 = vmatpush1.xpose.msra.mxu0 %v98
    %246 = vmatprep.subr.mxu0 %v93
    %247 = vmatpush1.xpose.msra.mxu0 %v92
    %248 = vmatprep.subr.mxu0 %v87
    %249 = vmatpush1.xpose.msra.mxu0 %v86
    %250 = vmatprep.subr.mxu0 %v81
    %251 = vmatpush1.xpose.msra.mxu0 %v80
    %252 = vmatprep.subr.mxu0 %v75
    %253 = vmatpush1.xpose.msra.mxu0 %v74
    %254 = vmatprep.subr.mxu0 %v69
    %255 = vmatpush1.xpose.msra.mxu0 %v68
    %256 = vmatprep.subr.mxu0 %v63
    %257 = vmatpush1.xpose.msra.mxu0 %v62
    %258 = vmatprep.subr.mxu0 0.0
    %259 = vmatpush2.xpose.msra.mxu0 0.0
    %260 = vmatprep.subr.mxu0 0.0
    %261 = vmatpush2.xpose.msra.mxu0 0.0
    %262 = vmatprep.subr.mxu0 0.0
    %263 = vmatpush2.xpose.msra.mxu0 0.0
    %264 = vmatprep.subr.mxu0 0.0
    %265 = vmatpush2.xpose.msra.mxu0 0.0
    %266 = vmatprep.subr.mxu0 0.0
    %267 = vmatpush2.xpose.msra.mxu0 0.0
    %268 = vmatprep.subr.mxu0 0.0
    %269 = vmatpush2.xpose.msra.mxu0 0.0
    %270 = vmatprep.subr.mxu0 0.0
    %271 = vmatpush2.xpose.msra.mxu0 0.0
    %272 = vmatprep.subr.mxu0 0.0
    %273 = vmatpush2.xpose.msra.mxu0 0.0
    %274 = vmatprep.subr.mxu0 0.0
    %275 = vmatpush2.xpose.msra.mxu0 0.0
    %276 = vmatprep.subr.mxu0 0.0
    %277 = vmatpush2.xpose.msra.mxu0 0.0
    %278 = vmatprep.subr.mxu0 0.0
    %279 = vmatpush2.xpose.msra.mxu0 0.0
    %280 = vmatprep.subr.mxu0 0.0
    %281 = vmatpush2.xpose.msra.mxu0 0.0
    %282 = vmatprep.subr.mxu0 0.0
    %283 = vmatpush2.xpose.msra.mxu0 0.0
    %284 = vmatprep.subr.mxu0 0.0
    %285 = vmatpush2.xpose.msra.mxu0 0.0
    %286 = vmatprep.subr.mxu0 0.0
    %287 = vmatpush2.xpose.msra.mxu0 0.0
    %288 = vmatprep.subr.mxu0 0.0
    %289 = vmatpush2.xpose.msra.mxu0 0.0
    %290 = vmatprep.mubr.f32.mxu0 %v57
    %291 = vmatmul.mubr.f32.gmra.mxu0 %v56
    %v292 = vpop.f32.mrf.mxu0
    %v293 = vadd.f32 %v223, %v292
    %v294 = vpop.f32.mrf.mxu0
    %295 = vdwg.mxu0
    %296 = vmatprep.subr.mxu0 %v155
    %297 = vmatpush1.xpose.msra.mxu0 %v154
    %298 = vmatprep.subr.mxu0 %v149
    %299 = vmatpush1.xpose.msra.mxu0 %v148
    %300 = vmatprep.subr.mxu0 %v143
    %301 = vmatpush1.xpose.msra.mxu0 %v142
    %302 = vmatprep.subr.mxu0 %v137
    %303 = vmatpush1.xpose.msra.mxu0 %v136
    %304 = vmatprep.subr.mxu0 %v131
    %305 = vmatpush1.xpose.msra.mxu0 %v130
    %306 = vmatprep.subr.mxu0 %v125
    %307 = vmatpush1.xpose.msra.mxu0 %v124
    %308 = vmatprep.subr.mxu0 %v119
    %309 = vmatpush1.xpose.msra.mxu0 %v118
    %310 = vmatprep.subr.mxu0 %v113
    %311 = vmatpush1.xpose.msra.mxu0 %v112
    %312 = vmatprep.subr.mxu0 %v107
    %313 = vmatpush1.xpose.msra.mxu0 %v106
    %314 = vmatprep.subr.mxu0 %v101
    %315 = vmatpush1.xpose.msra.mxu0 %v100
    %316 = vmatprep.subr.mxu0 %v95
    %317 = vmatpush1.xpose.msra.mxu0 %v94
    %318 = vmatprep.subr.mxu0 %v89
    %319 = vmatpush1.xpose.msra.mxu0 %v88
    %320 = vmatprep.subr.mxu0 %v83
    %321 = vmatpush1.xpose.msra.mxu0 %v82
    %322 = vmatprep.subr.mxu0 %v77
    %323 = vmatpush1.xpose.msra.mxu0 %v76
    %324 = vmatprep.subr.mxu0 %v71
    %325 = vmatpush1.xpose.msra.mxu0 %v70
    %326 = vmatprep.subr.mxu0 %v65
    %327 = vmatpush1.xpose.msra.mxu0 %v64
    %328 = vmatprep.subr.mxu0 0.0
    %329 = vmatpush2.xpose.msra.mxu0 0.0
    %330 = vmatprep.subr.mxu0 0.0
    %331 = vmatpush2.xpose.msra.mxu0 0.0
    %332 = vmatprep.subr.mxu0 0.0
    %333 = vmatpush2.xpose.msra.mxu0 0.0
    %334 = vmatprep.subr.mxu0 0.0
    %335 = vmatpush2.xpose.msra.mxu0 0.0
    %336 = vmatprep.subr.mxu0 0.0
    %337 = vmatpush2.xpose.msra.mxu0 0.0
    %338 = vmatprep.subr.mxu0 0.0
    %339 = vmatpush2.xpose.msra.mxu0 0.0
    %340 = vmatprep.subr.mxu0 0.0
    %341 = vmatpush2.xpose.msra.mxu0 0.0
    %342 = vmatprep.subr.mxu0 0.0
    %343 = vmatpush2.xpose.msra.mxu0 0.0
    %344 = vmatprep.subr.mxu0 0.0
    %345 = vmatpush2.xpose.msra.mxu0 0.0
    %346 = vmatprep.subr.mxu0 0.0
    %347 = vmatpush2.xpose.msra.mxu0 0.0
    %348 = vmatprep.subr.mxu0 0.0
    %349 = vmatpush2.xpose.msra.mxu0 0.0
    %350 = vmatprep.subr.mxu0 0.0
    %351 = vmatpush2.xpose.msra.mxu0 0.0
    %352 = vmatprep.subr.mxu0 0.0
    %353 = vmatpush2.xpose.msra.mxu0 0.0
    %354 = vmatprep.subr.mxu0 0.0
    %355 = vmatpush2.xpose.msra.mxu0 0.0
    %356 = vmatprep.subr.mxu0 0.0
    %357 = vmatpush2.xpose.msra.mxu0 0.0
    %358 = vmatprep.subr.mxu0 0.0
    %359 = vmatpush2.xpose.msra.mxu0 0.0
    %360 = vmatprep.mubr.f32.mxu0 %v59
    %361 = vmatmul.mubr.f32.gmra.mxu0 %v58
    %v362 = vpop.f32.mrf.mxu0
    %v363 = vadd.f32 %v293, %v362
    %v364 = vpop.f32.mrf.mxu0
    %365 = vdwg.mxu0
    %v366 = vadd.f32 %v53, %v363
    %367 = vst [vmem:[#allocation2] sm:$0xff] %v366
    // Predicated region
    $region26: #{tpu_custom_call.1} parent=1 // pred_check
      %p368 = pneg %p41
    $region27: #{tpu_custom_call.1} parent=1 // pred_check_branch
      %370 = sbr.rel (%p368) target = $region29
    $region28: #{tpu_custom_call.1} parent=1 // pred_region
      %v371 = vld [vmem:[#allocation2] sm:$0xff]
      %372 = vst [vmem:[#allocation8] sm:$0xff] %v371
    $region29: #{tpu_custom_call.1} parent=1 // pred_fallthru
      _
    // Predicated region
    $region30: #{tpu_custom_call.1} parent=1 // pred_check
      _
    $region31: #{tpu_custom_call.1} parent=1 // pred_check_branch
      %374 = sbr.rel (0) target = $region33
    $region32: #{tpu_custom_call.1} parent=1 // pred_region
      %s376 = ssub.s32 128, 128
      %377 = vsyncadd [#allocation5], %s376
      %s379 = sshll.u32 [#allocation8], 4
      %s380 = int_to_ptr.vmem [resolvable:$true] %s379
      %382 = dma.vmem_to_hbm [thread:$0]  %s380, 128, %s3, [#allocation5]
    $region33: #{tpu_custom_call.1} parent=1 // pred_fallthru
      _
    // Predicated region
    $region34: #{tpu_custom_call.1} parent=1 // pred_check
      _
    $region35: #{tpu_custom_call.1} parent=1 // pred_check_branch
      %384 = sbr.rel (0) target = $region37
    $region36: #{tpu_custom_call.1} parent=1 // pred_region
      %385 = dma.done [#allocation5], 128
    $region37: #{tpu_custom_call.1} parent=1 // pred_fallthru
      _
    %386 = vsyncpa [#allocation4], 1
    %387 = vsyncpa [#allocation7], 1
    %388 = vsyncpa [#allocation5], 1

</llo_original>
